<compile_context>
chip_gen: v7x
topology: tpu7x:2x2x1
jax: 0.10.0
libtpu: 0.0.40
codegen_flags: <defaults>
</compile_context>

<pallas_src>
import math
import functools

import jax
import jax.numpy as jnp
from jax.experimental import pallas as pl
from jax.experimental.pallas import tpu as pltpu


def _round_up(v, m):
    return ((v + m - 1) // m) * m


def _tpu_vmem_capacity_bytes():
    try:
        info = pltpu.get_tpu_info()
        cap = getattr(info, "vmem_capacity_bytes", None)
        if cap:
            return int(cap)
    except Exception:
        pass
    return 64 << 20  # conservative fallback (v7x per-TensorCore VMEM)


def _select_w_tile(W, block_w, parallel_rows):
    """Lane-dense W tile.  If the 'parallel' grid extent would be < 2, split W so both
    v7x TensorCores get work (harmless on single-TC v5e/v6e)."""
    if block_w is not None:
        w_tile = block_w
    elif W % 128 == 0:
        w_tile = W
        while w_tile > 2048 and (w_tile // 2) % 128 == 0:
            w_tile //= 2
        if parallel_rows * (W // w_tile) < 2 and w_tile % 256 == 0:
            w_tile //= 2
    else:
        w_tile = W  # full-extent block (valid even when W is not a multiple of 128)
    assert W % w_tile == 0
    assert w_tile == W or w_tile % 128 == 0
    return w_tile


def _select_t_tile(T, temporal_width, block_t, w_tile, vmem_cap):
    """T tile: multiple of 8, >= temporal_width, sized so the f32 working tile (and the Mosaic
    internal temporaries that scale with it) stays within the chip's VMEM budget."""
    min_t = _round_up(max(temporal_width, 1), 8)
    if block_t is not None:
        return max(_round_up(block_t, 8), min_t)
    f32_tile_budget = (4 << 20) if vmem_cap >= (96 << 20) else (2 << 20)
    t_cap = max(min_t, (f32_tile_budget // (4 * w_tile)) // 8 * 8)
    return max(min(t_cap, _round_up(max(T, temporal_width), 8)), min_t)


def _conv1d_kernel(hist_ref, x_ref, w_ref, b_ref, o_ref, carry_ref, *, temporal_width):
    # hist_ref : (1, hist_rows, tW)  history rows (cache, right-aligned) or zeros
    # x_ref    : (1, tT, tW)         current T tile of x (last T block may be ragged)
    # w_ref    : (TW, tW)            taps
    # b_ref    : (1, tW)             bias
    # o_ref    : (1, tT, tW)         output tile
    # carry_ref: (hist_rows, tW)     last hist_rows rows of the previous T tile (VMEM scratch)
    tw = temporal_width
    ti = pl.program_id(2)
    n_t = pl.num_programs(2)

    block_t = x_ref.shape[1]
    hist_rows = carry_ref.shape[0]

    wf = w_ref[...].astype(jnp.float32)                         # (TW, tW)
    bias = b_ref[0, :].astype(jnp.float32)[None, :]             # (1, tW)
    xf = x_ref[0].astype(jnp.float32)                           # (tT, tW)

    # Full-tile taps via rolls only; the wrap-around contaminates rows < tw-1, which are
    # overwritten by the small fixup below.
    acc = xf * wf[tw - 1, :][None, :]
    for shift in range(1, tw):                                  # static, fully unrolled
        acc = acc + pltpu.roll(xf, shift, axis=0) * wf[tw - 1 - shift, :][None, :]
    o_ref[0] = (acc + bias).astype(o_ref.dtype)

    if tw > 1:
        @pl.when(ti == 0)
        def _init_carry():
            carry_ref[...] = hist_ref[0].astype(carry_ref.dtype)

        # Small (hist_rows, tW) fixup of the first hist_rows rows using the carried halo.
        top_x = x_ref[0, 0:hist_rows, :].astype(jnp.float32)
        carry_f = carry_ref[...].astype(jnp.float32)
        row = jax.lax.broadcasted_iota(jnp.int32, top_x.shape, 0)
        top_acc = top_x * wf[tw - 1, :][None, :]
        for shift in range(1, tw):
            rolled_x = pltpu.roll(top_x, shift, axis=0)
            rolled_c = pltpu.roll(carry_f, shift, axis=0)
            # rows t >= shift take x[t-shift]; rows t < shift take carry[hist_rows + t - shift]
            src = jnp.where(row >= shift, rolled_x, rolled_c)
            top_acc = top_acc + src * wf[tw - 1 - shift, :][None, :]
        o_ref[0, 0:hist_rows, :] = (top_acc + bias).astype(o_ref.dtype)

        # Carry the last hist_rows rows of this tile to the next T tile (aligned slice store).
        # Never executed for the (possibly ragged) last tile, so garbage never enters a carry.
        @pl.when(ti + 1 < n_t)
        def _update_carry():
            carry_ref[...] = x_ref[0, block_t - hist_rows:, :]


def _conv1d_decode_kernel(hist_ref, x_ref, w_ref, b_ref, o_ref, *, temporal_width):
    # hist_ref: (max(TW-1,1), B, tW)  cache transposed so hist_ref[j] is a clean (B, tW) slab
    # x_ref   : (B, tW)               the single decode step for every batch row
    # o_ref   : (B, tW)
    tw = temporal_width
    wf = w_ref[...].astype(jnp.float32)
    acc = x_ref[...].astype(jnp.float32) * wf[tw - 1, :][None, :]
    for j in range(tw - 1):                                     # static, fully unrolled
        acc = acc + hist_ref[j].astype(jnp.float32) * wf[j, :][None, :]
    o_ref[...] = (acc + b_ref[0, :].astype(jnp.float32)[None, :]).astype(o_ref.dtype)


def _prefill_forward(x, w, b2d, cache, tw, block_t, block_w):
    B, T, W = x.shape
    vmem_cap = _tpu_vmem_capacity_bytes()
    w_tile = _select_w_tile(W, block_w, parallel_rows=B)
    t_tile = _select_t_tile(T, tw, block_t, w_tile, vmem_cap)
    hist_rows = _round_up(max(tw - 1, 1), 8)
    assert hist_rows <= t_tile

    if cache is not None and tw > 1:
        # Right-align the halo so carry[hist_rows - k] == x_prev[-k].
        hist = jnp.pad(cache.astype(x.dtype), ((0, 0), (hist_rows - (tw - 1), 0), (0, 0)))
    else:
        hist = jnp.zeros((B, hist_rows, W), dtype=x.dtype)

    grid = (B, W // w_tile, pl.cdiv(T, t_tile))

    itemsize = jnp.dtype(x.dtype).itemsize
    io_bytes = 2 * (2 * t_tile * w_tile + hist_rows * w_tile + tw * w_tile + w_tile) * itemsize
    internal_bytes = 6 * t_tile * w_tile * 4        # f32 temporaries inside the kernel body
    vmem_needed = io_bytes + hist_rows * w_tile * itemsize + internal_bytes + (1 << 20)
    vmem_limit = int(min(max(vmem_needed, 32 << 20), min(vmem_cap * 5 // 8, 100 << 20)))

    kernel = functools.partial(_conv1d_kernel, temporal_width=tw)
    return pl.pallas_call(
        kernel,
        out_shape=jax.ShapeDtypeStruct((B, T, W), x.dtype),
        grid_spec=pltpu.PrefetchScalarGridSpec(
            num_scalar_prefetch=0,
            grid=grid,
            in_specs=[
                pl.BlockSpec((1, hist_rows, w_tile), lambda bi, wi, ti: (bi, 0, wi)),
                pl.BlockSpec((1, t_tile, w_tile), lambda bi, wi, ti: (bi, ti, wi)),
                pl.BlockSpec((tw, w_tile), lambda bi, wi, ti: (0, wi)),
                pl.BlockSpec((1, w_tile), lambda bi, wi, ti: (0, wi)),
            ],
            out_specs=pl.BlockSpec((1, t_tile, w_tile), lambda bi, wi, ti: (bi, ti, wi)),
            scratch_shapes=[pltpu.VMEM((hist_rows, w_tile), x.dtype)],
        ),
        compiler_params=pltpu.CompilerParams(
            # T must stay the innermost "arbitrary" axis: the carry is only valid if ti==0
            # runs before all other ti for each (bi, wi).  Do not reorder / parallelize it.
            dimension_semantics=("parallel", "parallel", "arbitrary"),
            vmem_limit_bytes=vmem_limit,
        ),
    )(hist, x, w, b2d)


def _decode_forward(x, w, b2d, cache, tw, block_w):
    B, _, W = x.shape           # T == 1
    w_tile = _select_w_tile(W, block_w, parallel_rows=1)

    if tw > 1 and cache is not None:
        hist_t = jnp.transpose(cache.astype(x.dtype), (1, 0, 2))   # (tw-1, B, W); tiny
    else:
        hist_t = jnp.zeros((max(tw - 1, 1), B, W), dtype=x.dtype)
    x2d = x.reshape(B, W)

    kernel = functools.partial(_conv1d_decode_kernel, temporal_width=tw)
    out2d = pl.pallas_call(
        kernel,
        out_shape=jax.ShapeDtypeStruct((B, W), x.dtype),
        grid_spec=pltpu.PrefetchScalarGridSpec(
            num_scalar_prefetch=0,
            grid=(W // w_tile,),
            in_specs=[
                pl.BlockSpec((hist_t.shape[0], B, w_tile), lambda wi: (0, 0, wi)),
                pl.BlockSpec((B, w_tile), lambda wi: (0, wi)),
                pl.BlockSpec((tw, w_tile), lambda wi: (0, wi)),
                pl.BlockSpec((1, w_tile), lambda wi: (0, wi)),
            ],
            out_specs=pl.BlockSpec((B, w_tile), lambda wi: (0, wi)),
        ),
        compiler_params=pltpu.CompilerParams(
            dimension_semantics=("parallel",),
        ),
    )(hist_t, x2d, w, b2d)
    return out2d.reshape(B, 1, W)


def conv1d_forward(x, w, b, cache=None, return_cache=True, *, segment_pos=None,
                   block_t=None, block_w=None):
    """Pallas implementation of Conv1D.forward.

    x: (B, T, W), w: (temporal_width, W), b: (W,), cache: optional (B, temporal_width-1, W).
    `segment_pos` is accepted for API parity with the PyTorch module and (like there) unused.
    Returns (conv_out, new_cache).
    """
    del segment_pos
    temporal_width, w_width = w.shape
    B, T, W = x.shape
    assert w_width == W and b.shape == (W,)
    if cache is not None:
        assert cache.shape == (B, temporal_width - 1, W)
    tw = temporal_width
    b2d = b.reshape(1, W)

    if T == 1:
        conv_out = _decode_forward(x, w, b2d, cache, tw, block_w)
    else:
        conv_out = _prefill_forward(x, w, b2d, cache, tw, block_t, block_w)

    if not return_cache:
        return conv_out, None

    cache_len = tw - 1
    cache_dtype = cache.dtype if cache is not None else x.dtype
    if cache_len == 0:
        # Mirrors the torch module's (degenerate) temporal_width==1 behavior.
        new_cache = (jnp.concatenate([cache.astype(x.dtype), x], axis=1)
                     if cache is not None else x)
    elif T >= cache_len:
        new_cache = x[:, T - cache_len:, :]
    elif cache is not None:
        new_cache = jnp.concatenate([cache[:, T:, :].astype(x.dtype), x], axis=1)
    else:
        new_cache = jnp.concatenate(
            [jnp.zeros((B, cache_len - T, W), dtype=x.dtype), x], axis=1)
    return conv_out, new_cache.astype(cache_dtype)


def conv1d_reference(x, w, b, cache=None):
    """Pure-JAX reference mirroring the PyTorch loop."""
    B, T, W = x.shape
    temporal_width = w.shape[0]
    if cache is not None:
        x_full = jnp.concatenate([cache.astype(x.dtype), x], axis=1)
        prompt_len = temporal_width - 1
    else:
        x_full = x
        prompt_len = 0
    out = jnp.zeros_like(x)
    for shift in range(temporal_width):
        start_idx = max(prompt_len - shift, 0)
        end_idx = prompt_len + T - shift
        if start_idx >= end_idx:
            continue
        win = x_full[:, start_idx:end_idx, :]
        pad_len = T - win.shape[1]
        win = jnp.concatenate([jnp.zeros((B, pad_len, W), dtype=x.dtype), win], axis=1)
        out = out + win * w[temporal_width - shift - 1][None, None, :]
    return out + b[None, None, :]


if __name__ == "__main__":
    batch, width, temporal_width = 2, 128, 4
    w_init_variance_scale = 0.01

    key = jax.random.PRNGKey(0)
    kw, kb, kc, kx1, kx2, kx3, kx4, kx5 = jax.random.split(key, 8)

    std = math.sqrt(w_init_variance_scale / temporal_width)
    w = std * jax.random.normal(kw, (temporal_width, width), dtype=jnp.float32)
    b = 0.1 * jax.random.normal(kb, (width,), dtype=jnp.float32)
    cache = jax.random.normal(kc, (batch, temporal_width - 1, width), dtype=jnp.float32)

    # Case 1: no cache, forced small T tile (block_t=8 -> 3 exact T tiles): exercises the carry.
    T1 = 24
    x1 = jax.random.normal(kx1, (batch, T1, width), dtype=jnp.float32)
    out1, nc1 = conv1d_forward(x1, w, b, cache=None, block_t=8)
    out1 = jax.block_until_ready(out1)
    assert out1.shape == (batch, T1, width)
    assert nc1.shape == (batch, temporal_width - 1, width)
    assert jnp.allclose(out1, conv1d_reference(x1, w, b), atol=1e-5, rtol=1e-5)
    assert jnp.allclose(nc1, x1[:, T1 - (temporal_width - 1):, :])

    # Case 2: ragged last T tile (T=21, block_t=8 -> 3 tiles, last has 5 valid rows).
    T2 = 21
    x2 = jax.random.normal(kx2, (batch, T2, width), dtype=jnp.float32)
    out2, nc2 = conv1d_forward(x2, w, b, cache=None, block_t=8)
    out2 = jax.block_until_ready(out2)
    assert jnp.allclose(out2, conv1d_reference(x2, w, b), atol=1e-5, rtol=1e-5)
    assert jnp.allclose(nc2, x2[:, T2 - (temporal_width - 1):, :])

    # Case 3: prefill with an existing cache (no HBM concat of x), default tiling.
    T3 = 8
    x3 = jax.random.normal(kx3, (batch, T3, width), dtype=jnp.float32)
    out3, nc3 = conv1d_forward(x3, w, b, cache=cache)
    out3 = jax.block_until_ready(out3)
    assert jnp.allclose(out3, conv1d_reference(x3, w, b, cache=cache), atol=1e-5, rtol=1e-5)
    assert jnp.allclose(nc3, x3[:, T3 - (temporal_width - 1):, :])

    # Case 4: single-token decode (T=1 with cache) -- exercises the decode-specialized kernel.
    x4 = jax.random.normal(kx4, (batch, 1, width), dtype=jnp.float32)
    out4, nc4 = conv1d_forward(x4, w, b, cache=cache)
    out4 = jax.block_until_ready(out4)
    assert jnp.allclose(out4, conv1d_reference(x4, w, b, cache=cache), atol=1e-5, rtol=1e-5)
    assert jnp.allclose(nc4, jnp.concatenate([cache[:, 1:, :], x4], axis=1))

    # Case 5: bf16 I/O (HBM-bound path); kernel still accumulates in f32.
    T5 = 24
    x5 = jax.random.normal(kx5, (batch, T5, width), dtype=jnp.float32).astype(jnp.bfloat16)
    wb, bb = w.astype(jnp.bfloat16), b.astype(jnp.bfloat16)
    out5, nc5 = conv1d_forward(x5, wb, bb, cache=None)
    out5 = jax.block_until_ready(out5)
    assert out5.dtype == jnp.bfloat16 and nc5.dtype == jnp.bfloat16
    ref5 = conv1d_reference(x5.astype(jnp.float32), wb.astype(jnp.float32),
                            bb.astype(jnp.float32))
    assert jnp.allclose(out5.astype(jnp.float32), ref5, atol=2e-2, rtol=2e-2)

    print("KERNEL_OK")
</pallas_src>

<mosaic_0001>
module attributes {stable_mosaic.version = 11 : i64} {
  func.func @_conv1d_kernel(%arg0: i32, %arg1: i32, %arg2: i32, %arg3: memref<1x8x128xf32, #tpu.memory_space<vmem>>, %arg4: memref<1x8x128xf32, #tpu.memory_space<vmem>>, %arg5: memref<4x128xf32, #tpu.memory_space<vmem>>, %arg6: memref<1x128xf32, #tpu.memory_space<vmem>>, %arg7: memref<1x8x128xf32, #tpu.memory_space<vmem>>, %arg8: memref<8x128xf32, #tpu.memory_space<vmem>>) attributes {dimension_semantics = [#tpu.dimension_semantics<parallel>, #tpu.dimension_semantics<parallel>, #tpu.dimension_semantics<arbitrary>], iteration_bounds = array<i64: 2, 1, 3>, scalar_prefetch = 0 : i64, scratch_operands = 1 : i64, tpu.core_type = #tpu.core_type<tc>, window_params = [{transform_indices = @transform_0, window_bounds = array<i64: 1, 8, 128>}, {transform_indices = @transform_1, window_bounds = array<i64: 1, 8, 128>}, {transform_indices = @transform_2, window_bounds = array<i64: 4, 128>}, {transform_indices = @transform_3, window_bounds = array<i64: 1, 128>}, {transform_indices = @transform_4, window_bounds = array<i64: 1, 8, 128>}]} {
    %c0 = arith.constant 0 : index
    %c0_0 = arith.constant 0 : index
    %0 = vector.load %arg5[%c0, %c0_0] : memref<4x128xf32, #tpu.memory_space<vmem>>, vector<4x128xf32>
    %c0_1 = arith.constant 0 : index
    %c0_2 = arith.constant 0 : index
    %1 = vector.load %arg6[%c0_1, %c0_2] : memref<1x128xf32, #tpu.memory_space<vmem>>, vector<1x128xf32>
    %2 = vector.shape_cast %1 : vector<1x128xf32> to vector<128xf32>
    %3 = vector.shape_cast %2 : vector<128xf32> to vector<1x128xf32>
    %c0_3 = arith.constant 0 : index
    %c0_4 = arith.constant 0 : index
    %c0_5 = arith.constant 0 : index
    %4 = vector.load %arg4[%c0_3, %c0_4, %c0_5] : memref<1x8x128xf32, #tpu.memory_space<vmem>>, vector<1x8x128xf32>
    %5 = vector.shape_cast %4 : vector<1x8x128xf32> to vector<8x128xf32>
    %6 = vector.extract_strided_slice %0 {offsets = [3, 0], sizes = [1, 128], strides = [1, 1]} : vector<4x128xf32> to vector<1x128xf32>
    %7 = vector.shape_cast %6 : vector<1x128xf32> to vector<128xf32>
    %8 = vector.shape_cast %7 : vector<128xf32> to vector<1x128xf32>
    %9 = vector.broadcast %8 : vector<1x128xf32> to vector<8x128xf32>
    %10 = arith.mulf %5, %9 : vector<8x128xf32>
    %c1_i32 = arith.constant 1 : i32
    %11 = tpu.dynamic_rotate %5 by %c1_i32 dim 0 : vector<8x128xf32>, i32 -> vector<8x128xf32>
    %12 = vector.extract_strided_slice %0 {offsets = [2, 0], sizes = [1, 128], strides = [1, 1]} : vector<4x128xf32> to vector<1x128xf32>
    %13 = vector.shape_cast %12 : vector<1x128xf32> to vector<128xf32>
    %14 = vector.shape_cast %13 : vector<128xf32> to vector<1x128xf32>
    %15 = vector.broadcast %14 : vector<1x128xf32> to vector<8x128xf32>
    %16 = arith.mulf %11, %15 : vector<8x128xf32>
    %17 = arith.addf %10, %16 : vector<8x128xf32>
    %c2_i32 = arith.constant 2 : i32
    %18 = tpu.dynamic_rotate %5 by %c2_i32 dim 0 : vector<8x128xf32>, i32 -> vector<8x128xf32>
    %19 = vector.extract_strided_slice %0 {offsets = [1, 0], sizes = [1, 128], strides = [1, 1]} : vector<4x128xf32> to vector<1x128xf32>
    %20 = vector.shape_cast %19 : vector<1x128xf32> to vector<128xf32>
    %21 = vector.shape_cast %20 : vector<128xf32> to vector<1x128xf32>
    %22 = vector.broadcast %21 : vector<1x128xf32> to vector<8x128xf32>
    %23 = arith.mulf %18, %22 : vector<8x128xf32>
    %24 = arith.addf %17, %23 : vector<8x128xf32>
    %c3_i32 = arith.constant 3 : i32
    %25 = tpu.dynamic_rotate %5 by %c3_i32 dim 0 : vector<8x128xf32>, i32 -> vector<8x128xf32>
    %26 = vector.extract_strided_slice %0 {offsets = [0, 0], sizes = [1, 128], strides = [1, 1]} : vector<4x128xf32> to vector<1x128xf32>
    %27 = vector.shape_cast %26 : vector<1x128xf32> to vector<128xf32>
    %28 = vector.shape_cast %27 : vector<128xf32> to vector<1x128xf32>
    %29 = vector.broadcast %28 : vector<1x128xf32> to vector<8x128xf32>
    %30 = arith.mulf %25, %29 : vector<8x128xf32>
    %31 = arith.addf %24, %30 : vector<8x128xf32>
    %32 = vector.broadcast %3 : vector<1x128xf32> to vector<8x128xf32>
    %33 = arith.addf %31, %32 : vector<8x128xf32>
    %c0_6 = arith.constant 0 : index
    %c0_7 = arith.constant 0 : index
    %c0_8 = arith.constant 0 : index
    %34 = vector.load %arg7[%c0_6, %c0_7, %c0_8] : memref<1x8x128xf32, #tpu.memory_space<vmem>>, vector<1x8x128xf32>
    %35 = vector.shape_cast %34 : vector<1x8x128xf32> to vector<8x128xf32>
    %36 = vector.shape_cast %33 : vector<8x128xf32> to vector<1x8x128xf32>
    tpu.vector_store %arg7[%c0_6, %c0_7, %c0_8], %36 {strides = array<i32>} : memref<1x8x128xf32, #tpu.memory_space<vmem>>, vector<1x8x128xf32>,
    %c0_i32 = arith.constant 0 : i32
    %37 = arith.cmpi eq, %arg2, %c0_i32 : i32
    %38 = arith.extui %37 : i1 to i32
    %c0_i32_9 = arith.constant 0 : i32
    %39 = arith.cmpi ne, %38, %c0_i32_9 : i32
    scf.if %39 {
      %c0_30 = arith.constant 0 : index
      %c0_31 = arith.constant 0 : index
      %c0_32 = arith.constant 0 : index
      %91 = vector.load %arg3[%c0_30, %c0_31, %c0_32] : memref<1x8x128xf32, #tpu.memory_space<vmem>>, vector<1x8x128xf32>
      %92 = vector.shape_cast %91 : vector<1x8x128xf32> to vector<8x128xf32>
      %c0_33 = arith.constant 0 : index
      %c0_34 = arith.constant 0 : index
      %93 = vector.load %arg8[%c0_33, %c0_34] : memref<8x128xf32, #tpu.memory_space<vmem>>, vector<8x128xf32>
      tpu.vector_store %arg8[%c0_33, %c0_34], %92 {strides = array<i32>} : memref<8x128xf32, #tpu.memory_space<vmem>>, vector<8x128xf32>,
    } else {
    }
    %c0_10 = arith.constant 0 : index
    %c0_11 = arith.constant 0 : index
    %c0_12 = arith.constant 0 : index
    %40 = vector.load %arg4[%c0_10, %c0_11, %c0_12] : memref<1x8x128xf32, #tpu.memory_space<vmem>>, vector<1x8x128xf32>
    %41 = vector.shape_cast %40 : vector<1x8x128xf32> to vector<8x128xf32>
    %c0_13 = arith.constant 0 : index
    %c0_14 = arith.constant 0 : index
    %42 = vector.load %arg8[%c0_13, %c0_14] : memref<8x128xf32, #tpu.memory_space<vmem>>, vector<8x128xf32>
    %43 = tpu.iota {dimensions = array<i32: 0>} : vector<8x128xi32>
    %44 = vector.extract_strided_slice %0 {offsets = [3, 0], sizes = [1, 128], strides = [1, 1]} : vector<4x128xf32> to vector<1x128xf32>
    %45 = vector.shape_cast %44 : vector<1x128xf32> to vector<128xf32>
    %46 = vector.shape_cast %45 : vector<128xf32> to vector<1x128xf32>
    %47 = vector.broadcast %46 : vector<1x128xf32> to vector<8x128xf32>
    %48 = arith.mulf %41, %47 : vector<8x128xf32>
    %c1_i32_15 = arith.constant 1 : i32
    %49 = tpu.dynamic_rotate %41 by %c1_i32_15 dim 0 : vector<8x128xf32>, i32 -> vector<8x128xf32>
    %c1_i32_16 = arith.constant 1 : i32
    %50 = tpu.dynamic_rotate %42 by %c1_i32_16 dim 0 : vector<8x128xf32>, i32 -> vector<8x128xf32>
    %c1_i32_17 = arith.constant 1 : i32
    %51 = vector.broadcast %c1_i32_17 : i32 to vector<8x128xi32>
    %52 = arith.cmpi sge, %43, %51 : vector<8x128xi32>
    %53 = arith.select %52, %49, %50 : vector<8x128xi1>, vector<8x128xf32>
    %54 = vector.extract_strided_slice %0 {offsets = [2, 0], sizes = [1, 128], strides = [1, 1]} : vector<4x128xf32> to vector<1x128xf32>
    %55 = vector.shape_cast %54 : vector<1x128xf32> to vector<128xf32>
    %56 = vector.shape_cast %55 : vector<128xf32> to vector<1x128xf32>
    %57 = vector.broadcast %56 : vector<1x128xf32> to vector<8x128xf32>
    %58 = arith.mulf %53, %57 : vector<8x128xf32>
    %59 = arith.addf %48, %58 : vector<8x128xf32>
    %c2_i32_18 = arith.constant 2 : i32
    %60 = tpu.dynamic_rotate %41 by %c2_i32_18 dim 0 : vector<8x128xf32>, i32 -> vector<8x128xf32>
    %c2_i32_19 = arith.constant 2 : i32
    %61 = tpu.dynamic_rotate %42 by %c2_i32_19 dim 0 : vector<8x128xf32>, i32 -> vector<8x128xf32>
    %c2_i32_20 = arith.constant 2 : i32
    %62 = vector.broadcast %c2_i32_20 : i32 to vector<8x128xi32>
    %63 = arith.cmpi sge, %43, %62 : vector<8x128xi32>
    %64 = arith.select %63, %60, %61 : vector<8x128xi1>, vector<8x128xf32>
    %65 = vector.extract_strided_slice %0 {offsets = [1, 0], sizes = [1, 128], strides = [1, 1]} : vector<4x128xf32> to vector<1x128xf32>
    %66 = vector.shape_cast %65 : vector<1x128xf32> to vector<128xf32>
    %67 = vector.shape_cast %66 : vector<128xf32> to vector<1x128xf32>
    %68 = vector.broadcast %67 : vector<1x128xf32> to vector<8x128xf32>
    %69 = arith.mulf %64, %68 : vector<8x128xf32>
    %70 = arith.addf %59, %69 : vector<8x128xf32>
    %c3_i32_21 = arith.constant 3 : i32
    %71 = tpu.dynamic_rotate %41 by %c3_i32_21 dim 0 : vector<8x128xf32>, i32 -> vector<8x128xf32>
    %c3_i32_22 = arith.constant 3 : i32
    %72 = tpu.dynamic_rotate %42 by %c3_i32_22 dim 0 : vector<8x128xf32>, i32 -> vector<8x128xf32>
    %c3_i32_23 = arith.constant 3 : i32
    %73 = vector.broadcast %c3_i32_23 : i32 to vector<8x128xi32>
    %74 = arith.cmpi sge, %43, %73 : vector<8x128xi32>
    %75 = arith.select %74, %71, %72 : vector<8x128xi1>, vector<8x128xf32>
    %76 = vector.extract_strided_slice %0 {offsets = [0, 0], sizes = [1, 128], strides = [1, 1]} : vector<4x128xf32> to vector<1x128xf32>
    %77 = vector.shape_cast %76 : vector<1x128xf32> to vector<128xf32>
    %78 = vector.shape_cast %77 : vector<128xf32> to vector<1x128xf32>
    %79 = vector.broadcast %78 : vector<1x128xf32> to vector<8x128xf32>
    %80 = arith.mulf %75, %79 : vector<8x128xf32>
    %81 = arith.addf %70, %80 : vector<8x128xf32>
    %82 = vector.broadcast %3 : vector<1x128xf32> to vector<8x128xf32>
    %83 = arith.addf %81, %82 : vector<8x128xf32>
    %c0_24 = arith.constant 0 : index
    %c0_25 = arith.constant 0 : index
    %c0_26 = arith.constant 0 : index
    %84 = vector.load %arg7[%c0_24, %c0_25, %c0_26] : memref<1x8x128xf32, #tpu.memory_space<vmem>>, vector<1x8x128xf32>
    %85 = vector.shape_cast %84 : vector<1x8x128xf32> to vector<8x128xf32>
    %86 = vector.shape_cast %83 : vector<8x128xf32> to vector<1x8x128xf32>
    tpu.vector_store %arg7[%c0_24, %c0_25, %c0_26], %86 {strides = array<i32>} : memref<1x8x128xf32, #tpu.memory_space<vmem>>, vector<1x8x128xf32>,
    %c1_i32_27 = arith.constant 1 : i32
    %87 = arith.addi %arg2, %c1_i32_27 : i32
    %c3_i32_28 = arith.constant 3 : i32
    %88 = arith.cmpi slt, %87, %c3_i32_28 : i32
    %89 = arith.extui %88 : i1 to i32
    %c0_i32_29 = arith.constant 0 : i32
    %90 = arith.cmpi ne, %89, %c0_i32_29 : i32
    scf.if %90 {
      %c0_30 = arith.constant 0 : index
      %c0_31 = arith.constant 0 : index
      %c0_32 = arith.constant 0 : index
      %91 = vector.load %arg4[%c0_30, %c0_31, %c0_32] : memref<1x8x128xf32, #tpu.memory_space<vmem>>, vector<1x8x128xf32>
      %92 = vector.shape_cast %91 : vector<1x8x128xf32> to vector<8x128xf32>
      %c0_33 = arith.constant 0 : index
      %c0_34 = arith.constant 0 : index
      %93 = vector.load %arg8[%c0_33, %c0_34] : memref<8x128xf32, #tpu.memory_space<vmem>>, vector<8x128xf32>
      tpu.vector_store %arg8[%c0_33, %c0_34], %92 {strides = array<i32>} : memref<8x128xf32, #tpu.memory_space<vmem>>, vector<8x128xf32>,
    } else {
    }
    return
  }
  func.func @transform_0(%arg0: i32, %arg1: i32, %arg2: i32) -> (i32, i32, i32) {
    %c0_i32 = arith.constant 0 : i32
    %c0_i32_0 = arith.constant 0 : i32
    return %arg0, %c0_i32, %arg1 : i32, i32, i32
  }
  func.func @transform_1(%arg0: i32, %arg1: i32, %arg2: i32) -> (i32, i32, i32) {
    %c0_i32 = arith.constant 0 : i32
    return %arg0, %arg2, %arg1 : i32, i32, i32
  }
  func.func @transform_2(%arg0: i32, %arg1: i32, %arg2: i32) -> (i32, i32) {
    %c0_i32 = arith.constant 0 : i32
    %c0_i32_0 = arith.constant 0 : i32
    return %c0_i32, %arg1 : i32, i32
  }
  func.func @transform_3(%arg0: i32, %arg1: i32, %arg2: i32) -> (i32, i32) {
    %c0_i32 = arith.constant 0 : i32
    %c0_i32_0 = arith.constant 0 : i32
    return %c0_i32, %arg1 : i32, i32
  }
  func.func @transform_4(%arg0: i32, %arg1: i32, %arg2: i32) -> (i32, i32, i32) {
    %c0_i32 = arith.constant 0 : i32
    return %arg0, %arg2, %arg1 : i32, i32, i32
  }
}

</mosaic_0001>

<llo_original>
// kernel: tpu_custom_call.1
$region0: #{tpu_custom_call.1}
  #allocation0 [shape = 'u32[]', space=smem, size = 0x4, offset = 0x4, fixed_abs, tag = 'smem constant byte address 0x4 - core index']
  #allocation1 [shape = 'u32[144,128]{1,0:T(1,128)}', space=vmem, size = 0x12000, scoped, tag = 'internal scratch']
  #allocation2 [shape = 'f32[8,128]{1,0:T(8,128)}', space=vmem, size = 0x1000, scoped, tag = 'scratch operand']
  %s0 = inlined_call_operand.hbm [shape: f32[2,8,128], index: 0, kind: input, shape index: {}]
  %s1 = inlined_call_operand.hbm [shape: f32[2,24,128], index: 1, kind: input, shape index: {}]
  %s2 = inlined_call_operand.vmem [shape: f32[4,128], index: 2, kind: input, shape index: {}]
  %s3 = inlined_call_operand.vmem [shape: f32[1,128], index: 3, kind: input, shape index: {}]
  %s4 = inlined_call_operand.hbm [shape: f32[2,24,128], index: 4, kind: output, shape index: {}]
  %s5 = sld [smem:[#allocation0]]
  $region65: #{tpu_custom_call.1} parent=0
    _
  %s7 = ssub.s32 1, %s5
  %s8 = scalar_select 0, %s7, %s5
  $region1: #{tpu_custom_call.1} parent=0
    #allocation3 [shape = 'u8[8192]{0}', space=vmem, size = 0x2000, scoped, tag = 'input window, operand 0']
    #allocation4 [shape = 's32[2]{0}', space=sflag, size = 0x8, scoped, tag = 'scoped memory for tpu_custom_call.1']
    #allocation5 [shape = 's32[2]{0}', space=sflag, size = 0x8, scoped, tag = 'scoped memory for tpu_custom_call.1']
    #allocation6 [shape = 'u8[8192]{0}', space=vmem, size = 0x2000, scoped, tag = 'input window, operand 1']
    #allocation7 [shape = 's32[2]{0}', space=sflag, size = 0x8, scoped, tag = 'scoped memory for tpu_custom_call.1']
    #allocation8 [shape = 'u8[8192]{0}', space=vmem, size = 0x2000, scoped, tag = 'output window, operand 0']
    %9 = vsyncpa [#allocation4], 0
    %s10 = scalar_lea.sflag [#allocation4], 1
    %11 = vsyncpa %s10, 0
    %12 = vsyncpa [#allocation7], 0
    %s13 = scalar_lea.sflag [#allocation7], 1
    %14 = vsyncpa %s13, 0
    %15 = vsyncpa [#allocation5], 0
    %s16 = scalar_lea.sflag [#allocation5], 1
    %17 = vsyncpa %s16, 0
    loop: start=0, step=1, limit=8
    $region2: #{tpu_custom_call.1} parent=1 // loop_pre_header
      _
    $region3: #{tpu_custom_call.1} parent=1 // loop_header
      %s19 = sphi 0, %s23
      %p20 = scmp.ge.s32.totalorder %s19, 8
      %s26 = sphi 0, %s45
      %s27 = sphi 0, %s41
      %s28 = sphi 0, %s37
      %s29 = sphi 0, %s26
      %s30 = sphi 0, %s27
      %s31 = sphi 0, %s28
      %s32 = sphi 0, %s29
      %s33 = sphi 0, %s30
      %s34 = sphi 0, %s31
      %s50 = sphi 0, %s52
      %s53 = sphi 0, %s50
      %s54 = sphi 0, %s53
      %s70 = sphi 0, %s54
      %s80 = sphi 0, %s82
      %s83 = sphi 0, %s80
      %s84 = sphi 0, %s83
      %s100 = sphi 0, %s84
      %s106 = sphi 0, %s108
      %s109 = sphi 0, %s106
      %s110 = sphi 0, %s109
      %s126 = sphi 0, %s110
      %s132 = sphi 0, %s134
      %s135 = sphi 0, %s132
      %s136 = sphi 0, %s135
      %s152 = sphi 0, %s136
      %s162 = sphi 0, %s164
      %s165 = sphi 0, %s162
      %s166 = sphi 0, %s165
      %s182 = sphi 0, %s166
    $region4: #{tpu_custom_call.1} parent=1 // loop_header_branch
      %22 = sbr.rel (%p20) target = $region8
    $region5: #{tpu_custom_call.1} parent=1 // loop_body
      %s24 = ssub.s32 %s19, 1
      %s25 = ssub.s32 %s19, 2
      %s35 = sadd.s32 1, %s28
      %p36 = scmp.ge.s32.totalorder %s35, 3
      %s37 = scalar_select %p36, 0, %s35
      %s38 = sadd.s32 1, %s27
      %s39 = scalar_select %p36, %s38, %s27
      %p40 = scmp.ge.s32.totalorder %s39, 1
      %s41 = scalar_select %p40, 0, %s39
      %s42 = sadd.s32 1, %s26
      %s43 = scalar_select %p40, %s42, %s26
      %p44 = scmp.ge.s32.totalorder %s43, 2
      %s45 = scalar_select %p44, 0, %s43
      %s46 = ssub.s32 %s26, %s45
      %s47 = ssub.s32 %s27, %s41
      %s48 = sor.u32 %s46, %s47
      %p49 = scmp.eq.s32.totalorder %s48, 0
      %s51 = sadd.s32 %s50, 1
      %s52 = scalar_select %p49, %s50, %s51
      %p55 = pneg %p49
      %p56 = scmp.eq.s32.totalorder %s19, 5
      %p57 = por %p55, %p56
      %p58 = scmp.ne.s32.totalorder %s50, %s53
      %p59 = scmp.eq.s32.totalorder %s19, 0
      %p60 = por %p58, %p59
      %p61 = scmp.ne.s32.totalorder %s50, %s53
      %p62 = scmp.eq.s32.totalorder %s24, 5
      %p63 = por %p61, %p62
      %p64 = scmp.ne.s32.totalorder %s53, %s54
      %p65 = scmp.eq.s32.totalorder %s24, 0
      %p66 = por %p64, %p65
      %p67 = scmp.ne.s32.totalorder %s53, %s54
      %p68 = scmp.eq.s32.totalorder %s25, 5
      %p69 = por %p67, %p68
      %p71 = scmp.ne.s32.totalorder %s54, %s70
      %p72 = scmp.eq.s32.totalorder %s25, 0
      %p73 = por %p71, %p72
      %s74 = ssub.s32 %s26, %s45
      %s75 = ssub.s32 %s28, %s37
      %s76 = sor.u32 %s74, %s75
      %s77 = ssub.s32 %s27, %s41
      %s78 = sor.u32 %s76, %s77
      %p79 = scmp.eq.s32.totalorder %s78, 0
      %s81 = sadd.s32 %s80, 1
      %s82 = scalar_select %p79, %s80, %s81
      %p85 = pneg %p79
      %p86 = scmp.eq.s32.totalorder %s19, 5
      %p87 = por %p85, %p86
      %p88 = scmp.ne.s32.totalorder %s80, %s83
      %p89 = scmp.eq.s32.totalorder %s19, 0
      %p90 = por %p88, %p89
      %p91 = scmp.ne.s32.totalorder %s80, %s83
      %p92 = scmp.eq.s32.totalorder %s24, 5
      %p93 = por %p91, %p92
      %p94 = scmp.ne.s32.totalorder %s83, %s84
      %p95 = scmp.eq.s32.totalorder %s24, 0
      %p96 = por %p94, %p95
      %p97 = scmp.ne.s32.totalorder %s83, %s84
      %p98 = scmp.eq.s32.totalorder %s25, 5
      %p99 = por %p97, %p98
      %p101 = scmp.ne.s32.totalorder %s84, %s100
      %p102 = scmp.eq.s32.totalorder %s25, 0
      %p103 = por %p101, %p102
      %s104 = ssub.s32 %s27, %s41
      %p105 = scmp.eq.s32.totalorder %s104, 0
      %s107 = sadd.s32 %s106, 1
      %s108 = scalar_select %p105, %s106, %s107
      %p111 = pneg %p105
      %p112 = scmp.eq.s32.totalorder %s19, 5
      %p113 = por %p111, %p112
      %p114 = scmp.ne.s32.totalorder %s106, %s109
      %p115 = scmp.eq.s32.totalorder %s19, 0
      %p116 = por %p114, %p115
      %p117 = scmp.ne.s32.totalorder %s106, %s109
      %p118 = scmp.eq.s32.totalorder %s24, 5
      %p119 = por %p117, %p118
      %p120 = scmp.ne.s32.totalorder %s109, %s110
      %p121 = scmp.eq.s32.totalorder %s24, 0
      %p122 = por %p120, %p121
      %p123 = scmp.ne.s32.totalorder %s109, %s110
      %p124 = scmp.eq.s32.totalorder %s25, 5
      %p125 = por %p123, %p124
      %p127 = scmp.ne.s32.totalorder %s110, %s126
      %p128 = scmp.eq.s32.totalorder %s25, 0
      %p129 = por %p127, %p128
      %s130 = ssub.s32 %s27, %s41
      %p131 = scmp.eq.s32.totalorder %s130, 0
      %s133 = sadd.s32 %s132, 1
      %s134 = scalar_select %p131, %s132, %s133
      %p137 = pneg %p131
      %p138 = scmp.eq.s32.totalorder %s19, 5
      %p139 = por %p137, %p138
      %p140 = scmp.ne.s32.totalorder %s132, %s135
      %p141 = scmp.eq.s32.totalorder %s19, 0
      %p142 = por %p140, %p141
      %p143 = scmp.ne.s32.totalorder %s132, %s135
      %p144 = scmp.eq.s32.totalorder %s24, 5
      %p145 = por %p143, %p144
      %p146 = scmp.ne.s32.totalorder %s135, %s136
      %p147 = scmp.eq.s32.totalorder %s24, 0
      %p148 = por %p146, %p147
      %p149 = scmp.ne.s32.totalorder %s135, %s136
      %p150 = scmp.eq.s32.totalorder %s25, 5
      %p151 = por %p149, %p150
      %p153 = scmp.ne.s32.totalorder %s136, %s152
      %p154 = scmp.eq.s32.totalorder %s25, 0
      %p155 = por %p153, %p154
      %s156 = ssub.s32 %s26, %s45
      %s157 = ssub.s32 %s28, %s37
      %s158 = sor.u32 %s156, %s157
      %s159 = ssub.s32 %s27, %s41
      %s160 = sor.u32 %s158, %s159
      %p161 = scmp.eq.s32.totalorder %s160, 0
      %s163 = sadd.s32 %s162, 1
      %s164 = scalar_select %p161, %s162, %s163
      %p167 = pneg %p161
      %p168 = scmp.eq.s32.totalorder %s19, 5
      %p169 = por %p167, %p168
      %p170 = scmp.ne.s32.totalorder %s162, %s165
      %p171 = scmp.eq.s32.totalorder %s19, 0
      %p172 = por %p170, %p171
      %p173 = scmp.ne.s32.totalorder %s162, %s165
      %p174 = scmp.eq.s32.totalorder %s24, 5
      %p175 = por %p173, %p174
      %p176 = scmp.ne.s32.totalorder %s165, %s166
      %p177 = scmp.eq.s32.totalorder %s24, 0
      %p178 = por %p176, %p177
      %p179 = scmp.ne.s32.totalorder %s165, %s166
      %p180 = scmp.eq.s32.totalorder %s25, 5
      %p181 = por %p179, %p180
      %p183 = scmp.ne.s32.totalorder %s166, %s182
      %p184 = scmp.eq.s32.totalorder %s25, 0
      %p185 = por %p183, %p184
      %p186 = scmp.le.s32.totalorder 1, %s19
      %p187 = scmp.lt.s32.totalorder %s19, 7
      %p188 = pnand %p186, %p187
      %p189 = pneg %p188
      // Predicated region
      $region9: #{tpu_custom_call.1} parent=5 // pred_check
        _
      $region10: #{tpu_custom_call.1} parent=5 // pred_check_branch
        %191 = sbr.rel (%p188) target = $region12
      $region11: #{tpu_custom_call.1} parent=5 // pred_region
        %s192 = ssub.s32 %s19, 1
        // Predicated region
        $region13: #{tpu_custom_call.1} parent=11 // pred_check
          %p193 = pneg %p122
        $region14: #{tpu_custom_call.1} parent=11 // pred_check_branch
          %195 = sbr.rel (%p193) target = $region16
        $region15: #{tpu_custom_call.1} parent=11 // pred_region
          %p196 = scmp.lt.s32.totalorder %s30, 0
          %s197 = scalar_select %p196, %s30, 0
          %s198 = smul.addr %s197, 4
          %s199 = scalar_lea.vmem %s2, %s198
        $region16: #{tpu_custom_call.1} parent=11 // pred_fallthru
          _
        // Predicated region
        $region17: #{tpu_custom_call.1} parent=11 // pred_check
          %p200 = pneg %p148
        $region18: #{tpu_custom_call.1} parent=11 // pred_check_branch
          %202 = sbr.rel (%p200) target = $region20
        $region19: #{tpu_custom_call.1} parent=11 // pred_region
          %p203 = scmp.lt.s32.totalorder %s30, 0
          %s204 = scalar_select %p203, %s30, 0
          %s205 = scalar_lea.vmem %s3, %s204
        $region20: #{tpu_custom_call.1} parent=11 // pred_fallthru
          _
      $region12: #{tpu_custom_call.1} parent=5 // pred_fallthru
        _
      %p206 = scmp.lt.s32.totalorder %s19, 6
      // Predicated region
      $region21: #{tpu_custom_call.1} parent=5 // pred_check
        %p207 = pneg %p206
      $region22: #{tpu_custom_call.1} parent=5 // pred_check_branch
        %209 = sbr.rel (%p207) target = $region24
      $region23: #{tpu_custom_call.1} parent=5 // pred_region
        // Predicated region
        $region25: #{tpu_custom_call.1} parent=23 // pred_check
          %p210 = pneg %p60
        $region26: #{tpu_custom_call.1} parent=23 // pred_check_branch
          %212 = sbr.rel (%p210) target = $region28
        $region27: #{tpu_custom_call.1} parent=23 // pred_region
          %s213 = sand.u32 %s50, 1
          %s214 = scalar_lea.sflag [#allocation4], %s213
          %s215 = sand.u32 %s50, 1
          %s216 = smul.addr %s215, 8
          %s217 = scalar_lea.vmem [#allocation3], %s216
          %s219 = ssub.s32 128, 128
          %220 = vsyncadd %s214, %s219
          %s221 = sadd.s32 %s27, %s26
          %s222 = smul.addr %s221, 128
          %s223 = scalar_lea.hbm %s0, %s222
          %s225 = sshll.u32 %s217, 4
          %s226 = int_to_ptr.vmem [resolvable:$true] %s225
          %228 = dma.hbm_to_vmem [thread:$0]  %s223, 128, %s226, %s214
        $region28: #{tpu_custom_call.1} parent=23 // pred_fallthru
          _
        // Predicated region
        $region29: #{tpu_custom_call.1} parent=23 // pred_check
          %p229 = pneg %p90
        $region30: #{tpu_custom_call.1} parent=23 // pred_check_branch
          %231 = sbr.rel (%p229) target = $region32
        $region31: #{tpu_custom_call.1} parent=23 // pred_region
          %s232 = sand.u32 %s80, 1
          %s233 = scalar_lea.sflag [#allocation7], %s232
          %s234 = sand.u32 %s80, 1
          %s235 = smul.addr %s234, 8
          %s236 = scalar_lea.vmem [#allocation6], %s235
          %s238 = ssub.s32 128, 128
          %239 = vsyncadd %s233, %s238
          %s240 = sadd.s32 %s27, %s28
          %s241 = smul.addr %s26, 3
          %s242 = sadd.s32 %s240, %s241
          %s243 = smul.addr %s242, 128
          %s244 = scalar_lea.hbm %s1, %s243
          %s246 = sshll.u32 %s236, 4
          %s247 = int_to_ptr.vmem [resolvable:$true] %s246
          %249 = dma.hbm_to_vmem [thread:$0]  %s244, 128, %s247, %s233
        $region32: #{tpu_custom_call.1} parent=23 // pred_fallthru
          _
      $region24: #{tpu_custom_call.1} parent=5 // pred_fallthru
        _
      %p250 = scmp.le.s32.totalorder 1, %s19
      %p251 = scmp.lt.s32.totalorder %s19, 7
      %p252 = pnand %p250, %p251
      %p253 = pneg %p252
      // Predicated region
      $region33: #{tpu_custom_call.1} parent=5 // pred_check
        _
      $region34: #{tpu_custom_call.1} parent=5 // pred_check_branch
        %255 = sbr.rel (%p252) target = $region36
      $region35: #{tpu_custom_call.1} parent=5 // pred_region
        %s256 = ssub.s32 %s19, 1
        %s257 = sand.u32 %s53, 1
        %s258 = scalar_lea.sflag [#allocation4], %s257
        %s259 = sand.u32 %s53, 1
        %s260 = smul.addr %s259, 8
        %s261 = scalar_lea.vmem [#allocation3], %s260
        // Predicated region
        $region37: #{tpu_custom_call.1} parent=35 // pred_check
          %p262 = pneg %p66
        $region38: #{tpu_custom_call.1} parent=35 // pred_check_branch
          %264 = sbr.rel (%p262) target = $region40
        $region39: #{tpu_custom_call.1} parent=35 // pred_region
          %265 = dma.done %s258, 128
        $region40: #{tpu_custom_call.1} parent=35 // pred_fallthru
          _
        %s266 = sand.u32 %s83, 1
        %s267 = scalar_lea.sflag [#allocation7], %s266
        %s268 = sand.u32 %s83, 1
        %s269 = smul.addr %s268, 8
        %s270 = scalar_lea.vmem [#allocation6], %s269
        // Predicated region
        $region41: #{tpu_custom_call.1} parent=35 // pred_check
          %p271 = pneg %p96
        $region42: #{tpu_custom_call.1} parent=35 // pred_check_branch
          %273 = sbr.rel (%p271) target = $region44
        $region43: #{tpu_custom_call.1} parent=35 // pred_region
          %274 = dma.done %s267, 128
        $region44: #{tpu_custom_call.1} parent=35 // pred_fallthru
          _
        %s275 = sand.u32 %s53, 1
        %s276 = scalar_lea.sflag [#allocation4], %s275
        %s277 = sand.u32 %s53, 1
        %s278 = smul.addr %s277, 8
        %s279 = scalar_lea.vmem [#allocation3], %s278
        %p280 = pneg %p66
        %p281 = pneg %p63
        %s282 = sand.u32 %s83, 1
        %s283 = scalar_lea.sflag [#allocation7], %s282
        %s284 = sand.u32 %s83, 1
        %s285 = smul.addr %s284, 8
        %s286 = scalar_lea.vmem [#allocation6], %s285
        %p287 = pneg %p96
        %p288 = pneg %p93
        %p289 = scmp.lt.s32.totalorder %s30, 0
        %s290 = scalar_select %p289, %s30, 0
        %s291 = smul.addr %s290, 4
        %s292 = scalar_lea.vmem %s2, %s291
        %p293 = pneg %p122
        %p294 = pneg %p119
        %p295 = scmp.lt.s32.totalorder %s30, 0
        %s296 = scalar_select %p295, %s30, 0
        %s297 = scalar_lea.vmem %s3, %s296
        %p298 = pneg %p148
        %p299 = pneg %p145
        %p300 = pneg %p178
        %p301 = pneg %p175
        %s302 = sand.u32 %s165, 1
        %s303 = scalar_lea.sflag [#allocation5], %s302
        %s304 = sand.u32 %s165, 1
        %s305 = smul.addr %s304, 8
        %s306 = scalar_lea.vmem [#allocation8], %s305
        %p307 = scmp.lt.s32.totalorder %s30, 0
        %s308 = scalar_select %p307, %s30, 0
        %s309 = smul.addr %s308, 4
        %s310 = scalar_lea.vmem %s2, %s309
        %p311 = scmp.lt.s32.totalorder %s30, 0
        %s312 = scalar_select %p311, %s30, 0
        %s313 = scalar_lea.vmem %s3, %s312
        %v314 = vld [vmem:[%s310] sm:$0xf]
        %v315 = vld [vmem:[%s313] sm:$0x1]
        %v316 = vld [vmem:[%s270] sm:$0xff]
        %v317 = vlaneseq
        %v318 = vshrl.u32 %v317, 7
        %v319 = vsub.s32 3, %v318
        %v320 = vrot.slane %v314, %v319
        %v321 = vmul.f32 %v316, %v320
        %v322 = vrot.slane %v316, 7
        %v323 = vlaneseq
        %v324 = vshrl.u32 %v323, 7
        %v325 = vsub.s32 2, %v324
        %v326 = vrot.slane %v314, %v325
        %v327 = vmul.f32 %v322, %v326
        %v328 = vadd.f32 %v321, %v327
        %v329 = vrot.slane %v316, 6
        %v330 = vlaneseq
        %v331 = vshrl.u32 %v330, 7
        %v332 = vsub.s32 1, %v331
        %v333 = vrot.slane %v314, %v332
        %v334 = vmul.f32 %v329, %v333
        %v335 = vadd.f32 %v328, %v334
        %v336 = vrot.slane %v316, 5
        %v337 = vlaneseq
        %v338 = vshrl.u32 %v337, 7
        %v339 = vsub.s32 0, %v338
        %v340 = vrot.slane %v314, %v339
        %v341 = vmul.f32 %v336, %v340
        %v342 = vadd.f32 %v335, %v341
        %v344 = vlaneseq
        %v345 = vshrl.u32 %v344, 7
        %v346 = vsub.s32 0, %v345
        %v347 = vrot.slane %v315, %v346
        %v349 = vadd.f32 %v342, %v347
        %350 = vst [vmem:[%s306] sm:$0xff] %v349
        %p351 = scmp.eq.s32.totalorder %s31, 0
        // Predicated region
        $region45: #{tpu_custom_call.1} parent=35 // pred_check
          %p352 = pneg %p351
        $region46: #{tpu_custom_call.1} parent=35 // pred_check_branch
          %354 = sbr.rel (%p352) target = $region48
        $region47: #{tpu_custom_call.1} parent=35 // pred_region
          %v355 = vld [vmem:[%s261] sm:$0xff]
          %356 = vst [vmem:[#allocation2] sm:$0xff] %v355
        $region48: #{tpu_custom_call.1} parent=35 // pred_fallthru
          _
        %v357 = vld [vmem:[%s270] sm:$0xff]
        %v358 = vld [vmem:[#allocation2] sm:$0xff]
        %v359 = vlaneseq
        %v360 = vshrl.u32 %v359, 7
        %v361 = vmul.f32 %v357, %v320
        %v362 = vrot.slane %v357, 7
        %v363 = vrot.slane %v358, 7
        %vm364 = vcmp.ge.s32.totalorder %v360, 1
        %v365 = vsel %vm364, %v362, %v363
        %v366 = vmul.f32 %v365, %v326
        %v367 = vadd.f32 %v361, %v366
        %v368 = vrot.slane %v357, 6
        %v369 = vrot.slane %v358, 6
        %vm370 = vcmp.ge.s32.totalorder %v360, 2
        %v371 = vsel %vm370, %v368, %v369
        %v372 = vmul.f32 %v371, %v333
        %v373 = vadd.f32 %v367, %v372
        %v374 = vrot.slane %v357, 5
        %v375 = vrot.slane %v358, 5
        %vm376 = vcmp.ge.s32.totalorder %v360, 3
        %v377 = vsel %vm376, %v374, %v375
        %v378 = vmul.f32 %v377, %v340
        %v379 = vadd.f32 %v373, %v378
        %v380 = vadd.f32 %v379, %v347
        %381 = vst [vmem:[%s306] sm:$0xff] %v380
        %s382 = sadd.s32 %s31, 1
        %p383 = scmp.lt.s32.totalorder %s382, 3
        // Predicated region
        $region49: #{tpu_custom_call.1} parent=35 // pred_check
          %p384 = pneg %p383
        $region50: #{tpu_custom_call.1} parent=35 // pred_check_branch
          %386 = sbr.rel (%p384) target = $region52
        $region51: #{tpu_custom_call.1} parent=35 // pred_region
          %v387 = vld [vmem:[%s270] sm:$0xff]
          %388 = vst [vmem:[#allocation2] sm:$0xff] %v387
        $region52: #{tpu_custom_call.1} parent=35 // pred_fallthru
          _
        %s389 = sand.u32 %s165, 1
        %s390 = scalar_lea.sflag [#allocation5], %s389
        %s391 = sand.u32 %s165, 1
        %s392 = smul.addr %s391, 8
        %s393 = scalar_lea.vmem [#allocation8], %s392
        // Predicated region
        $region53: #{tpu_custom_call.1} parent=35 // pred_check
          %p394 = pneg %p175
        $region54: #{tpu_custom_call.1} parent=35 // pred_check_branch
          %396 = sbr.rel (%p394) target = $region56
        $region55: #{tpu_custom_call.1} parent=35 // pred_region
          %s398 = ssub.s32 128, 128
          %399 = vsyncadd %s390, %s398
          %s400 = sadd.s32 %s30, %s31
          %s401 = smul.addr %s29, 3
          %s402 = sadd.s32 %s400, %s401
          %s403 = smul.addr %s402, 128
          %s404 = scalar_lea.hbm %s4, %s403
          %s406 = sshll.u32 %s393, 4
          %s407 = int_to_ptr.vmem [resolvable:$true] %s406
          %409 = dma.vmem_to_hbm [thread:$0]  %s407, 128, %s404, %s390
        $region56: #{tpu_custom_call.1} parent=35 // pred_fallthru
          _
      $region36: #{tpu_custom_call.1} parent=5 // pred_fallthru
        _
      %p410 = scmp.le.s32.totalorder 2, %s19
      // Predicated region
      $region57: #{tpu_custom_call.1} parent=5 // pred_check
        %p411 = pneg %p410
      $region58: #{tpu_custom_call.1} parent=5 // pred_check_branch
        %413 = sbr.rel (%p411) target = $region60
      $region59: #{tpu_custom_call.1} parent=5 // pred_region
        %s414 = ssub.s32 %s19, 2
        // Predicated region
        $region61: #{tpu_custom_call.1} parent=59 // pred_check
          %p415 = pneg %p181
        $region62: #{tpu_custom_call.1} parent=59 // pred_check_branch
          %417 = sbr.rel (%p415) target = $region64
        $region63: #{tpu_custom_call.1} parent=59 // pred_region
          %s418 = sand.u32 %s166, 1
          %s419 = scalar_lea.sflag [#allocation5], %s418
          %s420 = sand.u32 %s166, 1
          %s421 = smul.addr %s420, 8
          %s422 = scalar_lea.vmem [#allocation8], %s421
          %423 = dma.done %s419, 128
        $region64: #{tpu_custom_call.1} parent=59 // pred_fallthru
          _
      $region60: #{tpu_custom_call.1} parent=5 // pred_fallthru
        _
    $region6: #{tpu_custom_call.1} parent=1 // loop_footer
      %s23 = sadd.s32 1, %s19
    $region7: #{tpu_custom_call.1} parent=1 // loop_footer_branch
      %18 = sbr.rel target = $region3
    $region8: #{tpu_custom_call.1} parent=1 // loop_exit
      _
    %424 = vsyncpa [#allocation4], 1
    %s425 = scalar_lea.sflag [#allocation4], 1
    %426 = vsyncpa %s425, 1
    %427 = vsyncpa [#allocation7], 1
    %s428 = scalar_lea.sflag [#allocation7], 1
    %429 = vsyncpa %s428, 1
    %430 = vsyncpa [#allocation5], 1
    %s431 = scalar_lea.sflag [#allocation5], 1
    %432 = vsyncpa %s431, 1

</llo_original>
